<compile_context>
chip_gen: v5e
topology: v5e:2x2
jax: 0.10.0
libtpu: 0.0.40
codegen_flags: <defaults>
</compile_context>

<pallas_src>
import math

import jax
import jax.numpy as jnp
from jax.experimental import pallas as pl
from jax.experimental.pallas import tpu as pltpu


def psgnlog_kernel(p_ref, x_ref, o_ref):
    """p_ref: (1, TF) parameter tile; x_ref / o_ref: (TB, TF) activation tiles."""
    x = x_ref[...].astype(jnp.float32)   # upcast: v5e VPU/EUP are f32-only
    p = p_ref[...].astype(jnp.float32)   # (1, TF) -> broadcasts over batch rows

    ax = jnp.abs(x)
    sgn = jnp.where(x < 0.0, -1.0, 1.0)  # sign; x==0 handled by log term == 0

    is_lin = p == 0.0                    # p == 0 -> linear limit f(x) = x
    safe_p = jnp.where(is_lin, 1.0, p)
    inv_p = pl.reciprocal(safe_p, approx=False)   # EUP; p row only (~1/TB of elems)

    y = sgn * jnp.log(1.0 + safe_p * ax) * inv_p
    o_ref[...] = jnp.where(is_lin, x, y).astype(o_ref.dtype)


def parameterized_sgnlog(x, p, *, block_features=2048, block_bytes=1 << 20):
    """x: (B, *in_size) activations; p: (*in_size) per-node parameters."""
    orig_shape = x.shape
    orig_dtype = x.dtype
    B = x.shape[0]
    F = math.prod(x.shape[1:])
    assert p.size == F, "p must have one parameter per node of the input"

    x2 = x.reshape(B, F)
    p2 = p.reshape(1, F)

    itemsize = jnp.dtype(orig_dtype).itemsize
    sub = max(8, 32 // itemsize)          # sublane multiple: 8 f32, 16 bf16, 32 int8

    # Feature tile: lane-dense multiple of 128 (or the full axis when F < 128).
    # If F isn't a multiple of tf, the last block is partial; Pallas masks the
    # tail writes, so no wrapper-side pad or output slice is needed.
    bf = max(128, (block_features // 128) * 128)
    if F % 128 == 0:
        tf = min(bf, F)
    elif F > 128:
        tf = min(bf, (F // 128) * 128)
    else:
        tf = F                            # full (untiled) feature axis

    # Batch tile: sized so one x block is ~block_bytes (~1 MiB default), rounded
    # to the sublane width; full batch when that already covers it.  Keeps the
    # double-buffered x/out (+ p) footprint well under every generation's
    # scoped-VMEM default (16 MiB v5e, 32 MiB v6e/v7x) and v7x's 64 MiB physical.
    tb = max(1, block_bytes // (tf * itemsize))
    tb = max(sub, (tb // sub) * sub)
    if tb >= B:
        tb = B

    # Feature axis outer, batch axis inner: p's block index is unchanged across
    # the inner loop, so its DMA is skipped and the tile stays resident in VMEM.
    grid = (pl.cdiv(F, tf), pl.cdiv(B, tb))

    out2 = pl.pallas_call(
        psgnlog_kernel,
        out_shape=jax.ShapeDtypeStruct((B, F), orig_dtype),
        grid=grid,
        in_specs=[
            pl.BlockSpec((1, tf), lambda f, b: (0, f)),    # p tile (batch-resident)
            pl.BlockSpec((tb, tf), lambda f, b: (b, f)),   # x tile
        ],
        out_specs=pl.BlockSpec((tb, tf), lambda f, b: (b, f)),
        compiler_params=pltpu.CompilerParams(
            dimension_semantics=("parallel", "parallel"),
        ),
        cost_estimate=pl.CostEstimate(
            flops=6 * B * F,
            transcendentals=B * F,
            bytes_accessed=(2 * B * F + F) * itemsize,
        ),
    )(p2, x2)

    return out2.reshape(orig_shape)


def parameterized_sgnlog_ref(x, p):
    """Pure-JAX reference of the assumed PyTorch forward."""
    pf = p.astype(jnp.float32)
    xf = x.astype(jnp.float32)
    safe_p = jnp.where(pf == 0.0, 1.0, pf)
    y = jnp.sign(xf) * jnp.log(1.0 + safe_p * jnp.abs(xf)) / safe_p
    return jnp.where(pf == 0.0, xf, y).astype(x.dtype)


if __name__ == "__main__":
    key = jax.random.PRNGKey(0)
    kx, kp, kx2, kp2 = jax.random.split(key, 4)

    # Case 1: NCHW-like activation, batch=2, channels=4, 16x16 spatial (F=1024).
    x = jax.random.normal(kx, (2, 4, 16, 16), dtype=jnp.float32) * 2.0
    p = 1.0 + 0.1 * jax.random.normal(kp, (4, 16, 16), dtype=jnp.float32)
    p = p.at[0, 0, 0].set(0.0)            # exercise the p == 0 linear-limit branch
    out = jax.block_until_ready(parameterized_sgnlog(x, p))
    ref = parameterized_sgnlog_ref(x, p)
    assert out.shape == x.shape and out.dtype == x.dtype
    assert jnp.allclose(out, ref, atol=1e-5, rtol=1e-5)

    # Case 2: ragged feature count F = 3*7*13 = 273 (not a 128 multiple) with
    # batch 16 — exercises the partial last block (no pad / slice) and a
    # multi-step feature grid.
    x2 = jax.random.normal(kx2, (16, 3, 7, 13), dtype=jnp.float32) * 2.0
    p2_param = 1.0 + 0.1 * jax.random.normal(kp2, (3, 7, 13), dtype=jnp.float32)
    out2 = jax.block_until_ready(parameterized_sgnlog(x2, p2_param))
    ref2 = parameterized_sgnlog_ref(x2, p2_param)
    assert out2.shape == x2.shape and out2.dtype == x2.dtype
    assert jnp.allclose(out2, ref2, atol=1e-5, rtol=1e-5)

    print("KERNEL_OK")
</pallas_src>

<mosaic_0001>
module attributes {stable_mosaic.version = 11 : i64} {
  func.func @psgnlog_kernel(%arg0: i32, %arg1: i32, %arg2: memref<1x1024xf32, #tpu.memory_space<vmem>>, %arg3: memref<2x1024xf32, #tpu.memory_space<vmem>>, %arg4: memref<2x1024xf32, #tpu.memory_space<vmem>>) attributes {dimension_semantics = [#tpu.dimension_semantics<parallel>, #tpu.dimension_semantics<parallel>], iteration_bounds = array<i64: 1, 1>, scalar_prefetch = 0 : i64, scratch_operands = 0 : i64, tpu.core_type = #tpu.core_type<tc>, window_params = [{transform_indices = @transform_0, window_bounds = array<i64: 1, 1024>}, {transform_indices = @transform_1, window_bounds = array<i64: 2, 1024>}, {transform_indices = @transform_2, window_bounds = array<i64: 2, 1024>}]} {
    %c0 = arith.constant 0 : index
    %c0_0 = arith.constant 0 : index
    %0 = vector.load %arg3[%c0, %c0_0] : memref<2x1024xf32, #tpu.memory_space<vmem>>, vector<2x1024xf32>
    %c0_1 = arith.constant 0 : index
    %c0_2 = arith.constant 0 : index
    %1 = vector.load %arg2[%c0_1, %c0_2] : memref<1x1024xf32, #tpu.memory_space<vmem>>, vector<1x1024xf32>
    %2 = math.absf %0 : vector<2x1024xf32>
    %cst = arith.constant 0.000000e+00 : f32
    %3 = vector.broadcast %cst : f32 to vector<2x1024xf32>
    %4 = arith.cmpf olt, %0, %3 : vector<2x1024xf32>
    %cst_3 = arith.constant -1.000000e+00 : f32
    %cst_4 = arith.constant 1.000000e+00 : f32
    %5 = vector.broadcast %cst_3 : f32 to vector<2x1024xf32>
    %6 = vector.broadcast %cst_4 : f32 to vector<2x1024xf32>
    %7 = arith.select %4, %5, %6 : vector<2x1024xi1>, vector<2x1024xf32>
    %cst_5 = arith.constant 0.000000e+00 : f32
    %8 = vector.broadcast %cst_5 : f32 to vector<1x1024xf32>
    %9 = arith.cmpf oeq, %1, %8 : vector<1x1024xf32>
    %cst_6 = arith.constant 1.000000e+00 : f32
    %10 = vector.broadcast %cst_6 : f32 to vector<1x1024xf32>
    %11 = arith.select %9, %10, %1 : vector<1x1024xi1>, vector<1x1024xf32>
    %12 = tpu.reciprocal %11 : vector<1x1024xf32> -> vector<1x1024xf32>
    %13 = vector.broadcast %11 : vector<1x1024xf32> to vector<2x1024xf32>
    %14 = arith.mulf %13, %2 : vector<2x1024xf32>
    %cst_7 = arith.constant 1.000000e+00 : f32
    %15 = vector.broadcast %cst_7 : f32 to vector<2x1024xf32>
    %16 = arith.addf %15, %14 : vector<2x1024xf32>
    %17 = math.log %16 : vector<2x1024xf32>
    %18 = arith.mulf %7, %17 : vector<2x1024xf32>
    %19 = vector.broadcast %12 : vector<1x1024xf32> to vector<2x1024xf32>
    %20 = arith.mulf %18, %19 : vector<2x1024xf32>
    %21 = vector.shape_cast %9 : vector<1x1024xi1> to vector<1x1024xi1>
    %22 = vector.broadcast %21 : vector<1x1024xi1> to vector<2x1024xi1>
    %23 = arith.select %22, %0, %20 : vector<2x1024xi1>, vector<2x1024xf32>
    %c0_8 = arith.constant 0 : index
    %c0_9 = arith.constant 0 : index
    %24 = vector.load %arg4[%c0_8, %c0_9] : memref<2x1024xf32, #tpu.memory_space<vmem>>, vector<2x1024xf32>
    tpu.vector_store %arg4[%c0_8, %c0_9], %23 {strides = array<i32>} : memref<2x1024xf32, #tpu.memory_space<vmem>>, vector<2x1024xf32>,
    return
  }
  func.func @transform_0(%arg0: i32, %arg1: i32) -> (i32, i32) {
    %c0_i32 = arith.constant 0 : i32
    %c0_i32_0 = arith.constant 0 : i32
    return %c0_i32, %arg0 : i32, i32
  }
  func.func @transform_1(%arg0: i32, %arg1: i32) -> (i32, i32) {
    %c0_i32 = arith.constant 0 : i32
    return %arg1, %arg0 : i32, i32
  }
  func.func @transform_2(%arg0: i32, %arg1: i32) -> (i32, i32) {
    %c0_i32 = arith.constant 0 : i32
    return %arg1, %arg0 : i32, i32
  }
}

</mosaic_0001>

<llo_original>
// kernel: tpu_custom_call.1
$region0: #{tpu_custom_call.1}
  #allocation0 [shape = 'u32[]', space=smem, size = 0x4, offset = 0x4, fixed_abs, tag = 'smem constant byte address 0x4 - core index']
  #allocation1 [shape = 'u32[72,128]{1,0:T(1,128)}', space=vmem, size = 0x9000, scoped, tag = 'internal scratch']
  %s0 = inlined_call_operand.hbm [shape: f32[1,1024], index: 0, kind: input, shape index: {}]
  %s1 = inlined_call_operand.hbm [shape: f32[2,1024], index: 1, kind: input, shape index: {}]
  %s2 = inlined_call_operand.hbm [shape: f32[2,1024], index: 2, kind: output, shape index: {}]
  %s3 = sld [smem:[#allocation0]]
  $region26: #{tpu_custom_call.1} parent=0
    _
  %s5 = ssub.s32 1, %s3
  %s6 = scalar_select 0, %s5, %s3
  $region1: #{tpu_custom_call.1} parent=0
    #allocation2 [shape = 'u8[4096]{0}', space=vmem, size = 0x1000, scoped, tag = 'input window, operand 0, single buffered']
    #allocation3 [shape = 's32[1]{0}', space=sflag, size = 0x4, scoped, tag = 'scoped memory for tpu_custom_call.1']
    #allocation4 [shape = 's32[1]{0}', space=sflag, size = 0x4, scoped, tag = 'scoped memory for tpu_custom_call.1']
    #allocation5 [shape = 'u8[8192]{0}', space=vmem, size = 0x2000, scoped, tag = 'input window, operand 1, single buffered']
    #allocation6 [shape = 's32[1]{0}', space=sflag, size = 0x4, scoped, tag = 'scoped memory for tpu_custom_call.1']
    #allocation7 [shape = 'u8[8192]{0}', space=vmem, size = 0x2000, scoped, tag = 'output window, operand 0, single buffered']
    %7 = vsyncpa [#allocation3], 0
    %8 = vsyncpa [#allocation6], 0
    %9 = vsyncpa [#allocation4], 0
    // Predicated region
    $region2: #{tpu_custom_call.1} parent=1 // pred_check
      _
    $region3: #{tpu_custom_call.1} parent=1 // pred_check_branch
      %11 = sbr.rel (0) target = $region5
    $region4: #{tpu_custom_call.1} parent=1 // pred_region
      %13 = vsyncadd [#allocation3], 0
      %s15 = sshll.u32 %s0, 4
      %s16 = int_to_ptr.hbm [resolvable:$true] %s15
      %s17 = sshll.u32 [#allocation2], 4
      %s18 = int_to_ptr.vmem [resolvable:$true] %s17
      %20 = dma.hbm_to_vmem [thread:$0]  %s16, 128, %s18, [#allocation3]
    $region5: #{tpu_custom_call.1} parent=1 // pred_fallthru
      _
    // Predicated region
    $region6: #{tpu_custom_call.1} parent=1 // pred_check
      _
    $region7: #{tpu_custom_call.1} parent=1 // pred_check_branch
      %22 = sbr.rel (0) target = $region9
    $region8: #{tpu_custom_call.1} parent=1 // pred_region
      %24 = vsyncadd [#allocation6], 0
      %s26 = sshll.u32 %s1, 4
      %s27 = int_to_ptr.hbm [resolvable:$true] %s26
      %s28 = sshll.u32 [#allocation5], 4
      %s29 = int_to_ptr.vmem [resolvable:$true] %s28
      %31 = dma.hbm_to_vmem [thread:$0]  %s27, 256, %s29, [#allocation6]
    $region9: #{tpu_custom_call.1} parent=1 // pred_fallthru
      _
    // Predicated region
    $region10: #{tpu_custom_call.1} parent=1 // pred_check
      _
    $region11: #{tpu_custom_call.1} parent=1 // pred_check_branch
      %33 = sbr.rel (0) target = $region13
    $region12: #{tpu_custom_call.1} parent=1 // pred_region
      %35 = dma.done [#allocation3], 128
    $region13: #{tpu_custom_call.1} parent=1 // pred_fallthru
      _
    // Predicated region
    $region14: #{tpu_custom_call.1} parent=1 // pred_check
      _
    $region15: #{tpu_custom_call.1} parent=1 // pred_check_branch
      %37 = sbr.rel (0) target = $region17
    $region16: #{tpu_custom_call.1} parent=1 // pred_region
      %39 = dma.done [#allocation6], 256
    $region17: #{tpu_custom_call.1} parent=1 // pred_fallthru
      _
    %v40 = vld [vmem:[#allocation5] sm:$0xff]
    %v41 = vld [vmem:[#allocation5 + $0x8] sm:$0xff]
    %v42 = vld [vmem:[#allocation2] sm:$0xff]
    %v43 = vand.u32 2147483647, %v40
    %v44 = vand.u32 2147483647, %v41
    %vm45 = vcmp.lt.f32.partialorder %v40, 0.0
    %vm46 = vcmp.lt.f32.partialorder %v41, 0.0
    %v47 = vsel %vm45, -1.0, 1.0
    %v48 = vsel %vm46, -1.0, 1.0
    %vm49 = vcmp.eq.f32.partialorder %v42, 0.0
    %v50 = vsel %vm49, 1.0, %v42
    %v51 = vrcp.pop %v50
    %v52 = vmul.f32 %v50, %v51
    %v53 = vsub.f32 1.0, %v52
    %v54 = vmul.f32 %v51, %v53
    %v55 = vadd.f32 %v51, %v54
    %vm56 = vweird.f32 %v50
    %vm57 = vweird.f32 %v51
    %vm58 = vmor %vm56, %vm57
    %v59 = vsel %vm58, %v51, %v55
    %v60 = vand.u32 2147483647, %v50
    %vm61 = vcmp.eq.f32.partialorder %v60, 8.507059e+37
    %v62 = vand.u32 %v50, 2147483648
    %v63 = vor.u32 1.1754944e-38, %v62
    %v64 = vsel %vm61, %v63, %v59
    %v66 = vperm.slane %v50, 0
    %v67 = vperm.slane %v50, 1
    %v68 = vperm.slane %v50, 2
    %v69 = vperm.slane %v50, 3
    %v70 = vperm.slane %v50, 4
    %v71 = vperm.slane %v50, 5
    %v72 = vperm.slane %v50, 6
    %v73 = vperm.slane %v50, 7
    %84 = vst [vmem:[#allocation1] ss:$4 sm:$0xff] %v43
    %s85 = scalar_lea.vmem [#allocation1], 32
    %86 = vst [vmem:[%s85] ss:$4 sm:$0xff] %v44
    %v87 = vld.sshfl [vmem:[#allocation1] sm:$0xff pattern:$0x73625140]
    %v88 = vld.sshfl [vmem:[#allocation1 + $0x8] sm:$0xff pattern:$0x73625140]
    %v89 = vld.sshfl [vmem:[#allocation1 + $0x10] sm:$0xff pattern:$0x73625140]
    %v90 = vld.sshfl [vmem:[#allocation1 + $0x18] sm:$0xff pattern:$0x73625140]
    %v91 = vld.sshfl [vmem:[#allocation1 + $0x20] sm:$0xff pattern:$0x73625140]
    %v92 = vld.sshfl [vmem:[#allocation1 + $0x28] sm:$0xff pattern:$0x73625140]
    %v93 = vld.sshfl [vmem:[#allocation1 + $0x30] sm:$0xff pattern:$0x73625140]
    %v94 = vld.sshfl [vmem:[#allocation1 + $0x38] sm:$0xff pattern:$0x73625140]
    %v103 = vmul.f32 %v66, %v87
    %v104 = vmul.f32 %v67, %v88
    %v105 = vmul.f32 %v68, %v89
    %v106 = vmul.f32 %v69, %v90
    %v107 = vmul.f32 %v70, %v91
    %v108 = vmul.f32 %v71, %v92
    %v109 = vmul.f32 %v72, %v93
    %v110 = vmul.f32 %v73, %v94
    %v111 = vadd.f32 %v103, 1.0
    %v112 = vadd.f32 %v104, 1.0
    %v113 = vadd.f32 %v105, 1.0
    %v114 = vadd.f32 %v106, 1.0
    %v115 = vadd.f32 %v107, 1.0
    %v116 = vadd.f32 %v108, 1.0
    %v117 = vadd.f32 %v109, 1.0
    %v118 = vadd.f32 %v110, 1.0
    %v119 = vlog2.pop %v111
    %v120 = vmul.f32 %v119, 0.6931472
    %v121 = vlog2.pop %v112
    %v122 = vmul.f32 %v121, 0.6931472
    %v123 = vlog2.pop %v113
    %v124 = vmul.f32 %v123, 0.6931472
    %v125 = vlog2.pop %v114
    %v126 = vmul.f32 %v125, 0.6931472
    %v127 = vlog2.pop %v115
    %v128 = vmul.f32 %v127, 0.6931472
    %v129 = vlog2.pop %v116
    %v130 = vmul.f32 %v129, 0.6931472
    %v131 = vlog2.pop %v117
    %v132 = vmul.f32 %v131, 0.6931472
    %v133 = vlog2.pop %v118
    %v134 = vmul.f32 %v133, 0.6931472
    %v143 = vrot.slane %v122, 6
    %v144 = vrot.slane %v124, 4
    %v145 = vrot.slane %v126, 2
    %v146 = vrot.slane %v130, 6
    %v147 = vrot.slane %v132, 4
    %v148 = vrot.slane %v134, 2
    %vm149 = vcmask 1041408
    %v150 = vsel %vm149, %v120, %v143
    %vm151 = vcmask 1045508
    %v152 = vsel %vm151, %v144, %v145
    %vm153 = vcmask 1043456
    %v154 = vsel %vm153, %v150, %v152
    %v155 = vsel %vm149, %v128, %v146
    %v156 = vsel %vm151, %v147, %v148
    %v157 = vsel %vm153, %v155, %v156
    %v160 = vmul.f32 %v47, %v154
    %v161 = vmul.f32 %v48, %v157
    %v163 = vperm.slane %v64, 0
    %v164 = vperm.slane %v64, 1
    %v165 = vperm.slane %v64, 2
    %v166 = vperm.slane %v64, 3
    %v167 = vperm.slane %v64, 4
    %v168 = vperm.slane %v64, 5
    %v169 = vperm.slane %v64, 6
    %v170 = vperm.slane %v64, 7
    %v171 = vrot.slane %v164, 6
    %v172 = vrot.slane %v165, 4
    %v173 = vrot.slane %v166, 2
    %v174 = vrot.slane %v168, 6
    %v175 = vrot.slane %v169, 4
    %v176 = vrot.slane %v170, 2
    %v177 = vsel %vm149, %v163, %v171
    %v178 = vsel %vm151, %v172, %v173
    %v179 = vsel %vm153, %v177, %v178
    %v180 = vsel %vm149, %v167, %v174
    %v181 = vsel %vm151, %v175, %v176
    %v182 = vsel %vm153, %v180, %v181
    %v185 = vmul.f32 %v160, %v179
    %v186 = vmul.f32 %v161, %v182
    %v187 = vsel %vm49, 1, 0
    %v188 = vperm.slane %v187, 0
    %v189 = vperm.slane %v187, 1
    %v190 = vperm.slane %v187, 2
    %v191 = vperm.slane %v187, 3
    %v192 = vperm.slane %v187, 4
    %v193 = vperm.slane %v187, 5
    %v194 = vperm.slane %v187, 6
    %v195 = vperm.slane %v187, 7
    %vm196 = vcmp.eq.s32.totalorder %v188, 1
    %vm197 = vcmp.eq.s32.totalorder %v189, 1
    %vm198 = vcmp.eq.s32.totalorder %v190, 1
    %vm199 = vcmp.eq.s32.totalorder %v191, 1
    %vm200 = vcmp.eq.s32.totalorder %v192, 1
    %vm201 = vcmp.eq.s32.totalorder %v193, 1
    %vm202 = vcmp.eq.s32.totalorder %v194, 1
    %vm203 = vcmp.eq.s32.totalorder %v195, 1
    %206 = vst [vmem:[#allocation1] ss:$4 sm:$0xff] %v40
    %s207 = scalar_lea.vmem [#allocation1], 32
    %208 = vst [vmem:[%s207] ss:$4 sm:$0xff] %v41
    %v209 = vld.sshfl [vmem:[#allocation1] sm:$0xff pattern:$0x73625140]
    %v210 = vld.sshfl [vmem:[#allocation1 + $0x8] sm:$0xff pattern:$0x73625140]
    %v211 = vld.sshfl [vmem:[#allocation1 + $0x10] sm:$0xff pattern:$0x73625140]
    %v212 = vld.sshfl [vmem:[#allocation1 + $0x18] sm:$0xff pattern:$0x73625140]
    %v213 = vld.sshfl [vmem:[#allocation1 + $0x20] sm:$0xff pattern:$0x73625140]
    %v214 = vld.sshfl [vmem:[#allocation1 + $0x28] sm:$0xff pattern:$0x73625140]
    %v215 = vld.sshfl [vmem:[#allocation1 + $0x30] sm:$0xff pattern:$0x73625140]
    %v216 = vld.sshfl [vmem:[#allocation1 + $0x38] sm:$0xff pattern:$0x73625140]
    %227 = vst [vmem:[#allocation1] ss:$4 sm:$0xff] %v185
    %s228 = scalar_lea.vmem [#allocation1], 32
    %229 = vst [vmem:[%s228] ss:$4 sm:$0xff] %v186
    %v230 = vld.sshfl [vmem:[#allocation1] sm:$0xff pattern:$0x73625140]
    %v231 = vld.sshfl [vmem:[#allocation1 + $0x8] sm:$0xff pattern:$0x73625140]
    %v232 = vld.sshfl [vmem:[#allocation1 + $0x10] sm:$0xff pattern:$0x73625140]
    %v233 = vld.sshfl [vmem:[#allocation1 + $0x18] sm:$0xff pattern:$0x73625140]
    %v234 = vld.sshfl [vmem:[#allocation1 + $0x20] sm:$0xff pattern:$0x73625140]
    %v235 = vld.sshfl [vmem:[#allocation1 + $0x28] sm:$0xff pattern:$0x73625140]
    %v236 = vld.sshfl [vmem:[#allocation1 + $0x30] sm:$0xff pattern:$0x73625140]
    %v237 = vld.sshfl [vmem:[#allocation1 + $0x38] sm:$0xff pattern:$0x73625140]
    %v246 = vsel %vm196, %v209, %v230
    %v247 = vsel %vm197, %v210, %v231
    %v248 = vsel %vm198, %v211, %v232
    %v249 = vsel %vm199, %v212, %v233
    %v250 = vsel %vm200, %v213, %v234
    %v251 = vsel %vm201, %v214, %v235
    %v252 = vsel %vm202, %v215, %v236
    %v253 = vsel %vm203, %v216, %v237
    %v262 = vrot.slane %v247, 6
    %v263 = vrot.slane %v248, 4
    %v264 = vrot.slane %v249, 2
    %v265 = vrot.slane %v251, 6
    %v266 = vrot.slane %v252, 4
    %v267 = vrot.slane %v253, 2
    %v268 = vsel %vm149, %v246, %v262
    %v269 = vsel %vm151, %v263, %v264
    %v270 = vsel %vm153, %v268, %v269
    %v271 = vsel %vm149, %v250, %v265
    %v272 = vsel %vm151, %v266, %v267
    %v273 = vsel %vm153, %v271, %v272
    %276 = vst [vmem:[#allocation7] sm:$0xff] %v270
    %277 = vst [vmem:[#allocation7 + $0x8] sm:$0xff] %v273
    // Predicated region
    $region18: #{tpu_custom_call.1} parent=1 // pred_check
      _
    $region19: #{tpu_custom_call.1} parent=1 // pred_check_branch
      %279 = sbr.rel (0) target = $region21
    $region20: #{tpu_custom_call.1} parent=1 // pred_region
      %281 = vsyncadd [#allocation4], 0
      %s283 = sshll.u32 [#allocation7], 4
      %s284 = int_to_ptr.vmem [resolvable:$true] %s283
      %s285 = sshll.u32 %s2, 4
      %s286 = int_to_ptr.hbm [resolvable:$true] %s285
      %288 = dma.vmem_to_hbm [thread:$0]  %s284, 256, %s286, [#allocation4]
    $region21: #{tpu_custom_call.1} parent=1 // pred_fallthru
      _
    // Predicated region
    $region22: #{tpu_custom_call.1} parent=1 // pred_check
      _
    $region23: #{tpu_custom_call.1} parent=1 // pred_check_branch
      %290 = sbr.rel (0) target = $region25
    $region24: #{tpu_custom_call.1} parent=1 // pred_region
      %292 = dma.done [#allocation4], 256
    $region25: #{tpu_custom_call.1} parent=1 // pred_fallthru
      _
    %293 = vsyncpa [#allocation3], 1
    %294 = vsyncpa [#allocation6], 1
    %295 = vsyncpa [#allocation4], 1

</llo_original>
